<compile_context>
chip_gen: v5e
topology: v5e:2x2
jax: 0.10.0
libtpu: 0.0.40
codegen_flags: <defaults>
</compile_context>

<pallas_src>
import functools

import jax
import jax.numpy as jnp
from jax.experimental import pallas as pl
from jax.experimental.pallas import tpu as pltpu


def _round_up(x, m):
    return (x + m - 1) // m * m


def _mlp_kernel(time_ref, action_ref, state_ref, freqs_ref,
                wt1s_ref, wt1c_ref, bt1_ref, wt2_ref, bt2_ref,
                w1a_ref, w1s_ref, w1t_ref, b1_ref,
                w2_ref, b2_ref, w3_ref, b3_ref,
                w4_ref, b4_ref, out_ref, *, matmul_dtype, precise):
    f32 = jnp.float32
    md = matmul_dtype

    def mish(x):
        if precise:
            # exact: x * tanh(softplus(x)); logaddexp(x, 0) is a stable softplus.
            return x * jnp.tanh(jnp.logaddexp(x, 0.0))
        # 1 EUP exp + approx reciprocal instead of ~3 transcendentals per element.
        # For x > 20 the ratio is 1.0 in f32, so clamping the exp input keeps
        # mish(x) == x there with no overflow and no extra select.
        e = jnp.exp(jnp.minimum(x, 20.0))
        sp2 = (1.0 + e) * (1.0 + e)
        return x * (sp2 - 1.0) * pl.reciprocal(sp2 + 1.0, approx=True)

    def hdot(a, w_ref):
        # hidden-layer matmul: bf16 (or f32) operands, f32 accumulation on MXU.
        return jnp.dot(a.astype(md), w_ref[...], preferred_element_type=f32)

    # --- time_net: PositionalEncoding -> Linear -> Mish -> Linear (all f32) ---
    t = time_ref[...]                        # (TB, 1)
    emb = t * freqs_ref[...]                 # (TB, half)
    # split-wt1 form of concat([sin, cos]) @ wt1  (no lane concat needed)
    h_t = (jnp.dot(jnp.sin(emb), wt1s_ref[...], preferred_element_type=f32)
           + jnp.dot(jnp.cos(emb), wt1c_ref[...], preferred_element_type=f32)
           + bt1_ref[...])
    h_t = mish(h_t)
    time_feat = jnp.dot(h_t, wt2_ref[...], preferred_element_type=f32) + bt2_ref[...]

    # --- main net; concat([action, state, time_feat]) @ w1 as three dots ---
    h = (hdot(action_ref[...], w1a_ref)
         + hdot(state_ref[...], w1s_ref)
         + hdot(time_feat, w1t_ref)
         + b1_ref[...])
    h = mish(h)
    h = mish(hdot(h, w2_ref) + b2_ref[...])
    h = mish(hdot(h, w3_ref) + b3_ref[...])
    out = hdot(h, w4_ref) + b4_ref[...]      # (TB, out_pad) lane-dense

    out_ref[...] = out.astype(out_ref.dtype)


def init_params(key, state_dim, action_dim, hidden_dim=256, time_dim=16):
    """Deterministic synthetic parameters (weights are [in, out], biases [1, out])."""
    dims = [
        ("wt1", (time_dim, time_dim * 2)), ("bt1", (1, time_dim * 2)),
        ("wt2", (time_dim * 2, time_dim)), ("bt2", (1, time_dim)),
        ("w1", (state_dim + action_dim + time_dim, hidden_dim)), ("b1", (1, hidden_dim)),
        ("w2", (hidden_dim, hidden_dim)), ("b2", (1, hidden_dim)),
        ("w3", (hidden_dim, hidden_dim)), ("b3", (1, hidden_dim)),
        ("w4", (hidden_dim, action_dim)), ("b4", (1, action_dim)),
    ]
    params = {}
    keys = jax.random.split(key, len(dims))
    for k, (name, shape) in zip(keys, dims):
        fan_in = shape[0] if name.startswith("w") else shape[1]
        scale = 1.0 / jnp.sqrt(jnp.float32(fan_in))
        params[name] = jax.random.uniform(k, shape, jnp.float32, -scale, scale)
    return params


@functools.partial(jax.jit, static_argnames=("time_dim", "fast"))
def mlp_forward(action, state, time, params, *, time_dim=16, fast=True):
    batch = action.shape[0]
    action_dim = action.shape[-1]
    state_dim = state.shape[-1]
    half = time_dim // 2
    f32 = jnp.float32
    md = jnp.bfloat16 if fast else jnp.float32

    # --- batch tiling: TB rows per grid step, batch padded to a multiple of TB ---
    TB = min(512, _round_up(batch, 8))
    b_pad = _round_up(batch, TB)
    pad = b_pad - batch

    time_2d = time.reshape(batch, 1).astype(f32)
    action_f = action.astype(f32)
    state_f = state.astype(f32)
    if pad:
        time_2d = jnp.pad(time_2d, ((0, pad), (0, 0)))
        action_f = jnp.pad(action_f, ((0, pad), (0, 0)))
        state_f = jnp.pad(state_f, ((0, pad), (0, 0)))

    # PositionalEncoding frequencies: exp(arange(half) * -log(10000)/(half-1))
    log_scale = jnp.log(10000.0) / (half - 1)
    freqs = jnp.exp(jnp.arange(half, dtype=f32) * -log_scale).reshape(1, half)

    # Pre-split weights (removes in-kernel concats) and pad the output to 128 lanes.
    wt1_sin = params["wt1"][:half].astype(f32)
    wt1_cos = params["wt1"][half:].astype(f32)
    w1a = params["w1"][:action_dim].astype(md)
    w1s = params["w1"][action_dim:action_dim + state_dim].astype(md)
    w1t = params["w1"][action_dim + state_dim:].astype(md)
    w2 = params["w2"].astype(md)
    w3 = params["w3"].astype(md)
    out_pad = _round_up(action_dim, 128)
    w4p = jnp.pad(params["w4"], ((0, 0), (0, out_pad - action_dim))).astype(md)
    b4p = jnp.pad(params["b4"], ((0, 0), (0, out_pad - action_dim))).astype(f32)

    inputs = (
        time_2d, action_f, state_f, freqs,
        wt1_sin, wt1_cos, params["bt1"].astype(f32),
        params["wt2"].astype(f32), params["bt2"].astype(f32),
        w1a, w1s, w1t, params["b1"].astype(f32),
        w2, params["b2"].astype(f32), w3, params["b3"].astype(f32),
        w4p, b4p,
    )

    def row_spec(d):
        return pl.BlockSpec((TB, d), lambda i: (i, 0))

    def full_spec(a):
        return pl.BlockSpec(a.shape, lambda i: (0, 0))   # resident across grid steps

    in_specs = [
        row_spec(1), row_spec(action_dim), row_spec(state_dim),
        full_spec(freqs), full_spec(wt1_sin), full_spec(wt1_cos), full_spec(inputs[6]),
        full_spec(inputs[7]), full_spec(inputs[8]),
        full_spec(w1a), full_spec(w1s), full_spec(w1t), full_spec(inputs[12]),
        full_spec(w2), full_spec(inputs[14]), full_spec(w3), full_spec(inputs[16]),
        full_spec(w4p), full_spec(b4p),
    ]

    kernel = functools.partial(_mlp_kernel, matmul_dtype=md, precise=not fast)

    out_padded = pl.pallas_call(
        kernel,
        out_shape=jax.ShapeDtypeStruct((b_pad, out_pad), f32),
        grid=(b_pad // TB,),
        in_specs=in_specs,
        out_specs=pl.BlockSpec((TB, out_pad), lambda i: (i, 0)),
        compiler_params=pltpu.CompilerParams(
            dimension_semantics=("parallel",),
            vmem_limit_bytes=48 * 1024 * 1024,
        ),
    )(*inputs)

    return out_padded[:batch, :action_dim]


def mlp_reference(action, state, time, params, time_dim=16):
    """Pure-JAX reference mirroring the PyTorch module."""
    half = time_dim // 2
    log_scale = jnp.log(10000.0) / (half - 1)
    freqs = jnp.exp(jnp.arange(half, dtype=jnp.float32) * -log_scale)
    emb = time[:, None] * freqs[None, :]
    pe = jnp.concatenate([jnp.sin(emb), jnp.cos(emb)], axis=-1)

    def mish(x):
        return x * jnp.tanh(jax.nn.softplus(x))

    h = mish(pe @ params["wt1"] + params["bt1"])
    tf = h @ params["wt2"] + params["bt2"]
    x = jnp.concatenate([action, state, tf], axis=-1)
    h = mish(x @ params["w1"] + params["b1"])
    h = mish(h @ params["w2"] + params["b2"])
    h = mish(h @ params["w3"] + params["b3"])
    return h @ params["w4"] + params["b4"]


if __name__ == "__main__":
    # Small shapes consistent with the module's forward.
    batch, state_dim, action_dim, hidden_dim, time_dim = 8, 16, 8, 32, 16

    key = jax.random.PRNGKey(0)
    k_p, k_a, k_s, k_t = jax.random.split(key, 4)
    params = init_params(k_p, state_dim, action_dim, hidden_dim, time_dim)

    action = jax.random.normal(k_a, (batch, action_dim), jnp.float32)
    state = jax.random.normal(k_s, (batch, state_dim), jnp.float32)
    time = jax.random.uniform(k_t, (batch,), jnp.float32, 0.0, 1.0)

    ref = mlp_reference(action, state, time, params, time_dim)

    # precise path (f32 operands, exact Mish): tight tolerance
    out_precise = jax.block_until_ready(
        mlp_forward(action, state, time, params, time_dim=time_dim, fast=False))
    assert out_precise.shape == (batch, action_dim)
    assert jnp.allclose(out_precise, ref, atol=1e-4, rtol=1e-4), "precise mismatch"

    # fast path (bf16 matmul operands, 1-exp Mish with approx reciprocal)
    out_fast = jax.block_until_ready(
        mlp_forward(action, state, time, params, time_dim=time_dim, fast=True))
    assert out_fast.shape == (batch, action_dim)
    assert jnp.allclose(out_fast, ref, atol=5e-2, rtol=5e-2), "fast mismatch"

    print("KERNEL_OK")
</pallas_src>

<mosaic_0001>
module attributes {stable_mosaic.version = 11 : i64} {
  func.func @_mlp_kernel(%arg0: i32, %arg1: memref<8x1xf32, #tpu.memory_space<vmem>>, %arg2: memref<8x8xf32, #tpu.memory_space<vmem>>, %arg3: memref<8x16xf32, #tpu.memory_space<vmem>>, %arg4: memref<1x8xf32, #tpu.memory_space<vmem>>, %arg5: memref<8x32xf32, #tpu.memory_space<vmem>>, %arg6: memref<8x32xf32, #tpu.memory_space<vmem>>, %arg7: memref<1x32xf32, #tpu.memory_space<vmem>>, %arg8: memref<32x16xf32, #tpu.memory_space<vmem>>, %arg9: memref<1x16xf32, #tpu.memory_space<vmem>>, %arg10: memref<8x32xf32, #tpu.memory_space<vmem>>, %arg11: memref<16x32xf32, #tpu.memory_space<vmem>>, %arg12: memref<16x32xf32, #tpu.memory_space<vmem>>, %arg13: memref<1x32xf32, #tpu.memory_space<vmem>>, %arg14: memref<32x32xf32, #tpu.memory_space<vmem>>, %arg15: memref<1x32xf32, #tpu.memory_space<vmem>>, %arg16: memref<32x32xf32, #tpu.memory_space<vmem>>, %arg17: memref<1x32xf32, #tpu.memory_space<vmem>>, %arg18: memref<32x128xf32, #tpu.memory_space<vmem>>, %arg19: memref<1x128xf32, #tpu.memory_space<vmem>>, %arg20: memref<8x128xf32, #tpu.memory_space<vmem>>) attributes {dimension_semantics = [#tpu.dimension_semantics<parallel>], iteration_bounds = array<i64: 1>, scalar_prefetch = 0 : i64, scratch_operands = 0 : i64, tpu.core_type = #tpu.core_type<tc>, window_params = [{transform_indices = @transform_0, window_bounds = array<i64: 8, 1>}, {transform_indices = @transform_1, window_bounds = array<i64: 8, 8>}, {transform_indices = @transform_2, window_bounds = array<i64: 8, 16>}, {pipeline_mode = #tpu.pipeline_mode<synchronous>, transform_indices = @transform_3, window_bounds = array<i64: 1, 8>}, {pipeline_mode = #tpu.pipeline_mode<synchronous>, transform_indices = @transform_4, window_bounds = array<i64: 8, 32>}, {pipeline_mode = #tpu.pipeline_mode<synchronous>, transform_indices = @transform_5, window_bounds = array<i64: 8, 32>}, {pipeline_mode = #tpu.pipeline_mode<synchronous>, transform_indices = @transform_6, window_bounds = array<i64: 1, 32>}, {pipeline_mode = #tpu.pipeline_mode<synchronous>, transform_indices = @transform_7, window_bounds = array<i64: 32, 16>}, {pipeline_mode = #tpu.pipeline_mode<synchronous>, transform_indices = @transform_8, window_bounds = array<i64: 1, 16>}, {pipeline_mode = #tpu.pipeline_mode<synchronous>, transform_indices = @transform_9, window_bounds = array<i64: 8, 32>}, {pipeline_mode = #tpu.pipeline_mode<synchronous>, transform_indices = @transform_10, window_bounds = array<i64: 16, 32>}, {pipeline_mode = #tpu.pipeline_mode<synchronous>, transform_indices = @transform_11, window_bounds = array<i64: 16, 32>}, {pipeline_mode = #tpu.pipeline_mode<synchronous>, transform_indices = @transform_12, window_bounds = array<i64: 1, 32>}, {pipeline_mode = #tpu.pipeline_mode<synchronous>, transform_indices = @transform_13, window_bounds = array<i64: 32, 32>}, {pipeline_mode = #tpu.pipeline_mode<synchronous>, transform_indices = @transform_14, window_bounds = array<i64: 1, 32>}, {pipeline_mode = #tpu.pipeline_mode<synchronous>, transform_indices = @transform_15, window_bounds = array<i64: 32, 32>}, {pipeline_mode = #tpu.pipeline_mode<synchronous>, transform_indices = @transform_16, window_bounds = array<i64: 1, 32>}, {pipeline_mode = #tpu.pipeline_mode<synchronous>, transform_indices = @transform_17, window_bounds = array<i64: 32, 128>}, {pipeline_mode = #tpu.pipeline_mode<synchronous>, transform_indices = @transform_18, window_bounds = array<i64: 1, 128>}, {transform_indices = @transform_19, window_bounds = array<i64: 8, 128>}]} {
    %c0 = arith.constant 0 : index
    %c0_0 = arith.constant 0 : index
    %0 = vector.load %arg1[%c0, %c0_0] : memref<8x1xf32, #tpu.memory_space<vmem>>, vector<8x1xf32>
    %c0_1 = arith.constant 0 : index
    %c0_2 = arith.constant 0 : index
    %1 = vector.load %arg4[%c0_1, %c0_2] : memref<1x8xf32, #tpu.memory_space<vmem>>, vector<1x8xf32>
    %2 = vector.broadcast %0 : vector<8x1xf32> to vector<8x8xf32>
    %3 = vector.broadcast %1 : vector<1x8xf32> to vector<8x8xf32>
    %4 = arith.mulf %2, %3 : vector<8x8xf32>
    %5 = math.sin %4 : vector<8x8xf32>
    %c0_3 = arith.constant 0 : index
    %c0_4 = arith.constant 0 : index
    %6 = vector.load %arg5[%c0_3, %c0_4] : memref<8x32xf32, #tpu.memory_space<vmem>>, vector<8x32xf32>
    %cst = arith.constant dense<0.000000e+00> : vector<8x32xf32>
    %7 = tpu.matmul %5, %6, %cst {dimension_numbers = #tpu.dot_dimension_numbers<[1], [0], [0], [1], [0, 0, 1, 1], [], []>} : vector<8x8xf32>, vector<8x32xf32>, vector<8x32xf32> -> vector<8x32xf32>
    %8 = math.cos %4 : vector<8x8xf32>
    %c0_5 = arith.constant 0 : index
    %c0_6 = arith.constant 0 : index
    %9 = vector.load %arg6[%c0_5, %c0_6] : memref<8x32xf32, #tpu.memory_space<vmem>>, vector<8x32xf32>
    %cst_7 = arith.constant dense<0.000000e+00> : vector<8x32xf32>
    %10 = tpu.matmul %8, %9, %cst_7 {dimension_numbers = #tpu.dot_dimension_numbers<[1], [0], [0], [1], [0, 0, 1, 1], [], []>} : vector<8x8xf32>, vector<8x32xf32>, vector<8x32xf32> -> vector<8x32xf32>
    %11 = arith.addf %7, %10 : vector<8x32xf32>
    %c0_8 = arith.constant 0 : index
    %c0_9 = arith.constant 0 : index
    %12 = vector.load %arg7[%c0_8, %c0_9] : memref<1x32xf32, #tpu.memory_space<vmem>>, vector<1x32xf32>
    %13 = vector.broadcast %12 : vector<1x32xf32> to vector<8x32xf32>
    %14 = arith.addf %11, %13 : vector<8x32xf32>
    %cst_10 = arith.constant 0.000000e+00 : f32
    %15 = vector.broadcast %cst_10 : f32 to vector<8x32xf32>
    %16 = arith.maximumf %14, %15 : vector<8x32xf32>
    %17 = vector.broadcast %cst_10 : f32 to vector<8x32xf32>
    %18 = arith.subf %14, %17 : vector<8x32xf32>
    %19 = arith.cmpf one, %18, %18 : vector<8x32xf32>
    %20 = vector.broadcast %cst_10 : f32 to vector<8x32xf32>
    %21 = arith.addf %14, %20 : vector<8x32xf32>
    %22 = math.absf %18 : vector<8x32xf32>
    %cst_11 = arith.constant 0.000000e+00 : f32
    %23 = vector.broadcast %cst_11 : f32 to vector<8x32xf32>
    %24 = arith.subf %23, %22 : vector<8x32xf32>
    %25 = math.exp %24 : vector<8x32xf32>
    %26 = math.log1p %25 : vector<8x32xf32>
    %27 = arith.addf %16, %26 : vector<8x32xf32>
    %28 = arith.select %19, %21, %27 : vector<8x32xi1>, vector<8x32xf32>
    %29 = math.tanh %28 : vector<8x32xf32>
    %30 = arith.mulf %14, %29 : vector<8x32xf32>
    %c0_12 = arith.constant 0 : index
    %c0_13 = arith.constant 0 : index
    %31 = vector.load %arg8[%c0_12, %c0_13] : memref<32x16xf32, #tpu.memory_space<vmem>>, vector<32x16xf32>
    %cst_14 = arith.constant dense<0.000000e+00> : vector<8x16xf32>
    %32 = tpu.matmul %30, %31, %cst_14 {dimension_numbers = #tpu.dot_dimension_numbers<[1], [0], [0], [1], [0, 0, 1, 1], [], []>} : vector<8x32xf32>, vector<32x16xf32>, vector<8x16xf32> -> vector<8x16xf32>
    %c0_15 = arith.constant 0 : index
    %c0_16 = arith.constant 0 : index
    %33 = vector.load %arg9[%c0_15, %c0_16] : memref<1x16xf32, #tpu.memory_space<vmem>>, vector<1x16xf32>
    %34 = vector.broadcast %33 : vector<1x16xf32> to vector<8x16xf32>
    %35 = arith.addf %32, %34 : vector<8x16xf32>
    %c0_17 = arith.constant 0 : index
    %c0_18 = arith.constant 0 : index
    %36 = vector.load %arg2[%c0_17, %c0_18] : memref<8x8xf32, #tpu.memory_space<vmem>>, vector<8x8xf32>
    %c0_19 = arith.constant 0 : index
    %c0_20 = arith.constant 0 : index
    %37 = vector.load %arg10[%c0_19, %c0_20] : memref<8x32xf32, #tpu.memory_space<vmem>>, vector<8x32xf32>
    %cst_21 = arith.constant dense<0.000000e+00> : vector<8x32xf32>
    %38 = tpu.matmul %36, %37, %cst_21 {dimension_numbers = #tpu.dot_dimension_numbers<[1], [0], [0], [1], [0, 0, 1, 1], [], []>} : vector<8x8xf32>, vector<8x32xf32>, vector<8x32xf32> -> vector<8x32xf32>
    %c0_22 = arith.constant 0 : index
    %c0_23 = arith.constant 0 : index
    %39 = vector.load %arg3[%c0_22, %c0_23] : memref<8x16xf32, #tpu.memory_space<vmem>>, vector<8x16xf32>
    %c0_24 = arith.constant 0 : index
    %c0_25 = arith.constant 0 : index
    %40 = vector.load %arg11[%c0_24, %c0_25] : memref<16x32xf32, #tpu.memory_space<vmem>>, vector<16x32xf32>
    %cst_26 = arith.constant dense<0.000000e+00> : vector<8x32xf32>
    %41 = tpu.matmul %39, %40, %cst_26 {dimension_numbers = #tpu.dot_dimension_numbers<[1], [0], [0], [1], [0, 0, 1, 1], [], []>} : vector<8x16xf32>, vector<16x32xf32>, vector<8x32xf32> -> vector<8x32xf32>
    %42 = arith.addf %38, %41 : vector<8x32xf32>
    %c0_27 = arith.constant 0 : index
    %c0_28 = arith.constant 0 : index
    %43 = vector.load %arg12[%c0_27, %c0_28] : memref<16x32xf32, #tpu.memory_space<vmem>>, vector<16x32xf32>
    %cst_29 = arith.constant dense<0.000000e+00> : vector<8x32xf32>
    %44 = tpu.matmul %35, %43, %cst_29 {dimension_numbers = #tpu.dot_dimension_numbers<[1], [0], [0], [1], [0, 0, 1, 1], [], []>} : vector<8x16xf32>, vector<16x32xf32>, vector<8x32xf32> -> vector<8x32xf32>
    %45 = arith.addf %42, %44 : vector<8x32xf32>
    %c0_30 = arith.constant 0 : index
    %c0_31 = arith.constant 0 : index
    %46 = vector.load %arg13[%c0_30, %c0_31] : memref<1x32xf32, #tpu.memory_space<vmem>>, vector<1x32xf32>
    %47 = vector.broadcast %46 : vector<1x32xf32> to vector<8x32xf32>
    %48 = arith.addf %45, %47 : vector<8x32xf32>
    %cst_32 = arith.constant 0.000000e+00 : f32
    %49 = vector.broadcast %cst_32 : f32 to vector<8x32xf32>
    %50 = arith.maximumf %48, %49 : vector<8x32xf32>
    %51 = vector.broadcast %cst_32 : f32 to vector<8x32xf32>
    %52 = arith.subf %48, %51 : vector<8x32xf32>
    %53 = arith.cmpf one, %52, %52 : vector<8x32xf32>
    %54 = vector.broadcast %cst_32 : f32 to vector<8x32xf32>
    %55 = arith.addf %48, %54 : vector<8x32xf32>
    %56 = math.absf %52 : vector<8x32xf32>
    %cst_33 = arith.constant 0.000000e+00 : f32
    %57 = vector.broadcast %cst_33 : f32 to vector<8x32xf32>
    %58 = arith.subf %57, %56 : vector<8x32xf32>
    %59 = math.exp %58 : vector<8x32xf32>
    %60 = math.log1p %59 : vector<8x32xf32>
    %61 = arith.addf %50, %60 : vector<8x32xf32>
    %62 = arith.select %53, %55, %61 : vector<8x32xi1>, vector<8x32xf32>
    %63 = math.tanh %62 : vector<8x32xf32>
    %64 = arith.mulf %48, %63 : vector<8x32xf32>
    %c0_34 = arith.constant 0 : index
    %c0_35 = arith.constant 0 : index
    %65 = vector.load %arg14[%c0_34, %c0_35] : memref<32x32xf32, #tpu.memory_space<vmem>>, vector<32x32xf32>
    %cst_36 = arith.constant dense<0.000000e+00> : vector<8x32xf32>
    %66 = tpu.matmul %64, %65, %cst_36 {dimension_numbers = #tpu.dot_dimension_numbers<[1], [0], [0], [1], [0, 0, 1, 1], [], []>} : vector<8x32xf32>, vector<32x32xf32>, vector<8x32xf32> -> vector<8x32xf32>
    %c0_37 = arith.constant 0 : index
    %c0_38 = arith.constant 0 : index
    %67 = vector.load %arg15[%c0_37, %c0_38] : memref<1x32xf32, #tpu.memory_space<vmem>>, vector<1x32xf32>
    %68 = vector.broadcast %67 : vector<1x32xf32> to vector<8x32xf32>
    %69 = arith.addf %66, %68 : vector<8x32xf32>
    %cst_39 = arith.constant 0.000000e+00 : f32
    %70 = vector.broadcast %cst_39 : f32 to vector<8x32xf32>
    %71 = arith.maximumf %69, %70 : vector<8x32xf32>
    %72 = vector.broadcast %cst_39 : f32 to vector<8x32xf32>
    %73 = arith.subf %69, %72 : vector<8x32xf32>
    %74 = arith.cmpf one, %73, %73 : vector<8x32xf32>
    %75 = vector.broadcast %cst_39 : f32 to vector<8x32xf32>
    %76 = arith.addf %69, %75 : vector<8x32xf32>
    %77 = math.absf %73 : vector<8x32xf32>
    %cst_40 = arith.constant 0.000000e+00 : f32
    %78 = vector.broadcast %cst_40 : f32 to vector<8x32xf32>
    %79 = arith.subf %78, %77 : vector<8x32xf32>
    %80 = math.exp %79 : vector<8x32xf32>
    %81 = math.log1p %80 : vector<8x32xf32>
    %82 = arith.addf %71, %81 : vector<8x32xf32>
    %83 = arith.select %74, %76, %82 : vector<8x32xi1>, vector<8x32xf32>
    %84 = math.tanh %83 : vector<8x32xf32>
    %85 = arith.mulf %69, %84 : vector<8x32xf32>
    %c0_41 = arith.constant 0 : index
    %c0_42 = arith.constant 0 : index
    %86 = vector.load %arg16[%c0_41, %c0_42] : memref<32x32xf32, #tpu.memory_space<vmem>>, vector<32x32xf32>
    %cst_43 = arith.constant dense<0.000000e+00> : vector<8x32xf32>
    %87 = tpu.matmul %85, %86, %cst_43 {dimension_numbers = #tpu.dot_dimension_numbers<[1], [0], [0], [1], [0, 0, 1, 1], [], []>} : vector<8x32xf32>, vector<32x32xf32>, vector<8x32xf32> -> vector<8x32xf32>
    %c0_44 = arith.constant 0 : index
    %c0_45 = arith.constant 0 : index
    %88 = vector.load %arg17[%c0_44, %c0_45] : memref<1x32xf32, #tpu.memory_space<vmem>>, vector<1x32xf32>
    %89 = vector.broadcast %88 : vector<1x32xf32> to vector<8x32xf32>
    %90 = arith.addf %87, %89 : vector<8x32xf32>
    %cst_46 = arith.constant 0.000000e+00 : f32
    %91 = vector.broadcast %cst_46 : f32 to vector<8x32xf32>
    %92 = arith.maximumf %90, %91 : vector<8x32xf32>
    %93 = vector.broadcast %cst_46 : f32 to vector<8x32xf32>
    %94 = arith.subf %90, %93 : vector<8x32xf32>
    %95 = arith.cmpf one, %94, %94 : vector<8x32xf32>
    %96 = vector.broadcast %cst_46 : f32 to vector<8x32xf32>
    %97 = arith.addf %90, %96 : vector<8x32xf32>
    %98 = math.absf %94 : vector<8x32xf32>
    %cst_47 = arith.constant 0.000000e+00 : f32
    %99 = vector.broadcast %cst_47 : f32 to vector<8x32xf32>
    %100 = arith.subf %99, %98 : vector<8x32xf32>
    %101 = math.exp %100 : vector<8x32xf32>
    %102 = math.log1p %101 : vector<8x32xf32>
    %103 = arith.addf %92, %102 : vector<8x32xf32>
    %104 = arith.select %95, %97, %103 : vector<8x32xi1>, vector<8x32xf32>
    %105 = math.tanh %104 : vector<8x32xf32>
    %106 = arith.mulf %90, %105 : vector<8x32xf32>
    %c0_48 = arith.constant 0 : index
    %c0_49 = arith.constant 0 : index
    %107 = vector.load %arg18[%c0_48, %c0_49] : memref<32x128xf32, #tpu.memory_space<vmem>>, vector<32x128xf32>
    %cst_50 = arith.constant dense<0.000000e+00> : vector<8x128xf32>
    %108 = tpu.matmul %106, %107, %cst_50 {dimension_numbers = #tpu.dot_dimension_numbers<[1], [0], [0], [1], [0, 0, 1, 1], [], []>} : vector<8x32xf32>, vector<32x128xf32>, vector<8x128xf32> -> vector<8x128xf32>
    %c0_51 = arith.constant 0 : index
    %c0_52 = arith.constant 0 : index
    %109 = vector.load %arg19[%c0_51, %c0_52] : memref<1x128xf32, #tpu.memory_space<vmem>>, vector<1x128xf32>
    %110 = vector.broadcast %109 : vector<1x128xf32> to vector<8x128xf32>
    %111 = arith.addf %108, %110 : vector<8x128xf32>
    %c0_53 = arith.constant 0 : index
    %c0_54 = arith.constant 0 : index
    %112 = vector.load %arg20[%c0_53, %c0_54] : memref<8x128xf32, #tpu.memory_space<vmem>>, vector<8x128xf32>
    tpu.vector_store %arg20[%c0_53, %c0_54], %111 {strides = array<i32>} : memref<8x128xf32, #tpu.memory_space<vmem>>, vector<8x128xf32>,
    return
  }
  func.func @transform_0(%arg0: i32) -> (i32, i32) {
    %c0_i32 = arith.constant 0 : i32
    %c0_i32_0 = arith.constant 0 : i32
    return %arg0, %c0_i32 : i32, i32
  }
  func.func @transform_1(%arg0: i32) -> (i32, i32) {
    %c0_i32 = arith.constant 0 : i32
    %c0_i32_0 = arith.constant 0 : i32
    return %arg0, %c0_i32 : i32, i32
  }
  func.func @transform_2(%arg0: i32) -> (i32, i32) {
    %c0_i32 = arith.constant 0 : i32
    %c0_i32_0 = arith.constant 0 : i32
    return %arg0, %c0_i32 : i32, i32
  }
  func.func @transform_3(%arg0: i32) -> (i32, i32) {
    %c0_i32 = arith.constant 0 : i32
    %c0_i32_0 = arith.constant 0 : i32
    %c0_i32_1 = arith.constant 0 : i32
    return %c0_i32, %c0_i32_0 : i32, i32
  }
  func.func @transform_4(%arg0: i32) -> (i32, i32) {
    %c0_i32 = arith.constant 0 : i32
    %c0_i32_0 = arith.constant 0 : i32
    %c0_i32_1 = arith.constant 0 : i32
    return %c0_i32, %c0_i32_0 : i32, i32
  }
  func.func @transform_5(%arg0: i32) -> (i32, i32) {
    %c0_i32 = arith.constant 0 : i32
    %c0_i32_0 = arith.constant 0 : i32
    %c0_i32_1 = arith.constant 0 : i32
    return %c0_i32, %c0_i32_0 : i32, i32
  }
  func.func @transform_6(%arg0: i32) -> (i32, i32) {
    %c0_i32 = arith.constant 0 : i32
    %c0_i32_0 = arith.constant 0 : i32
    %c0_i32_1 = arith.constant 0 : i32
    return %c0_i32, %c0_i32_0 : i32, i32
  }
  func.func @transform_7(%arg0: i32) -> (i32, i32) {
    %c0_i32 = arith.constant 0 : i32
    %c0_i32_0 = arith.constant 0 : i32
    %c0_i32_1 = arith.constant 0 : i32
    return %c0_i32, %c0_i32_0 : i32, i32
  }
  func.func @transform_8(%arg0: i32) -> (i32, i32) {
    %c0_i32 = arith.constant 0 : i32
    %c0_i32_0 = arith.constant 0 : i32
    %c0_i32_1 = arith.constant 0 : i32
    return %c0_i32, %c0_i32_0 : i32, i32
  }
  func.func @transform_9(%arg0: i32) -> (i32, i32) {
    %c0_i32 = arith.constant 0 : i32
    %c0_i32_0 = arith.constant 0 : i32
    %c0_i32_1 = arith.constant 0 : i32
    return %c0_i32, %c0_i32_0 : i32, i32
  }
  func.func @transform_10(%arg0: i32) -> (i32, i32) {
    %c0_i32 = arith.constant 0 : i32
    %c0_i32_0 = arith.constant 0 : i32
    %c0_i32_1 = arith.constant 0 : i32
    return %c0_i32, %c0_i32_0 : i32, i32
  }
  func.func @transform_11(%arg0: i32) -> (i32, i32) {
    %c0_i32 = arith.constant 0 : i32
    %c0_i32_0 = arith.constant 0 : i32
    %c0_i32_1 = arith.constant 0 : i32
    return %c0_i32, %c0_i32_0 : i32, i32
  }
  func.func @transform_12(%arg0: i32) -> (i32, i32) {
    %c0_i32 = arith.constant 0 : i32
    %c0_i32_0 = arith.constant 0 : i32
    %c0_i32_1 = arith.constant 0 : i32
    return %c0_i32, %c0_i32_0 : i32, i32
  }
  func.func @transform_13(%arg0: i32) -> (i32, i32) {
    %c0_i32 = arith.constant 0 : i32
    %c0_i32_0 = arith.constant 0 : i32
    %c0_i32_1 = arith.constant 0 : i32
    return %c0_i32, %c0_i32_0 : i32, i32
  }
  func.func @transform_14(%arg0: i32) -> (i32, i32) {
    %c0_i32 = arith.constant 0 : i32
    %c0_i32_0 = arith.constant 0 : i32
    %c0_i32_1 = arith.constant 0 : i32
    return %c0_i32, %c0_i32_0 : i32, i32
  }
  func.func @transform_15(%arg0: i32) -> (i32, i32) {
    %c0_i32 = arith.constant 0 : i32
    %c0_i32_0 = arith.constant 0 : i32
    %c0_i32_1 = arith.constant 0 : i32
    return %c0_i32, %c0_i32_0 : i32, i32
  }
  func.func @transform_16(%arg0: i32) -> (i32, i32) {
    %c0_i32 = arith.constant 0 : i32
    %c0_i32_0 = arith.constant 0 : i32
    %c0_i32_1 = arith.constant 0 : i32
    return %c0_i32, %c0_i32_0 : i32, i32
  }
  func.func @transform_17(%arg0: i32) -> (i32, i32) {
    %c0_i32 = arith.constant 0 : i32
    %c0_i32_0 = arith.constant 0 : i32
    %c0_i32_1 = arith.constant 0 : i32
    return %c0_i32, %c0_i32_0 : i32, i32
  }
  func.func @transform_18(%arg0: i32) -> (i32, i32) {
    %c0_i32 = arith.constant 0 : i32
    %c0_i32_0 = arith.constant 0 : i32
    %c0_i32_1 = arith.constant 0 : i32
    return %c0_i32, %c0_i32_0 : i32, i32
  }
  func.func @transform_19(%arg0: i32) -> (i32, i32) {
    %c0_i32 = arith.constant 0 : i32
    %c0_i32_0 = arith.constant 0 : i32
    return %arg0, %c0_i32 : i32, i32
  }
}

</mosaic_0001>

<llo_original>
// kernel: mlp_forward.1
$region0: #{mlp_forward.1}
  #allocation0 [shape = 'u32[]', space=smem, size = 0x4, offset = 0x4, fixed_abs, tag = 'smem constant byte address 0x4 - core index']
  #allocation1 [shape = 'u32[72,128]{1,0:T(1,128)}', space=vmem, size = 0x9000, scoped, tag = 'internal scratch']
  %s0 = inlined_call_operand.vmem [shape: f32[8,1], index: 0, kind: input, shape index: {}]
  %s1 = inlined_call_operand.vmem [shape: f32[8,8], index: 1, kind: input, shape index: {}]
  %s2 = inlined_call_operand.vmem [shape: f32[8,16], index: 2, kind: input, shape index: {}]
  %s3 = inlined_call_operand.vmem [shape: f32[1,8], index: 3, kind: input, shape index: {}]
  %s4 = inlined_call_operand.vmem [shape: f32[8,32], index: 4, kind: input, shape index: {}]
  %s5 = inlined_call_operand.vmem [shape: f32[8,32], index: 5, kind: input, shape index: {}]
  %s6 = inlined_call_operand.vmem [shape: f32[1,32], index: 6, kind: input, shape index: {}]
  %s7 = inlined_call_operand.vmem [shape: f32[32,16], index: 7, kind: input, shape index: {}]
  %s8 = inlined_call_operand.vmem [shape: f32[1,16], index: 8, kind: input, shape index: {}]
  %s9 = inlined_call_operand.vmem [shape: f32[8,32], index: 9, kind: input, shape index: {}]
  %s10 = inlined_call_operand.vmem [shape: f32[16,32], index: 10, kind: input, shape index: {}]
  %s11 = inlined_call_operand.vmem [shape: f32[16,32], index: 11, kind: input, shape index: {}]
  %s12 = inlined_call_operand.vmem [shape: f32[1,32], index: 12, kind: input, shape index: {}]
  %s13 = inlined_call_operand.vmem [shape: f32[32,32], index: 13, kind: input, shape index: {}]
  %s14 = inlined_call_operand.vmem [shape: f32[1,32], index: 14, kind: input, shape index: {}]
  %s15 = inlined_call_operand.vmem [shape: f32[32,32], index: 15, kind: input, shape index: {}]
  %s16 = inlined_call_operand.vmem [shape: f32[1,32], index: 16, kind: input, shape index: {}]
  %s17 = inlined_call_operand.vmem [shape: f32[32,128], index: 17, kind: input, shape index: {}]
  %s18 = inlined_call_operand.vmem [shape: f32[1,128], index: 18, kind: input, shape index: {}]
  %s19 = inlined_call_operand.hbm [shape: f32[8,128], index: 19, kind: output, shape index: {}]
  %s20 = sld [smem:[#allocation0]]
  $region86: #{mlp_forward.1} parent=0
    _
  %s22 = ssub.s32 1, %s20
  %s23 = scalar_select 0, %s22, %s20
  $region1: #{mlp_forward.1} parent=0
    #allocation2 [shape = 'u8[4096]{0}', space=vmem, size = 0x1000, scoped, tag = 'output window, operand 0, single buffered']
    #allocation3 [shape = 's32[1]{0}', space=sflag, size = 0x4, scoped, tag = 'scoped memory for mlp_forward.1']
    %24 = vsyncpa [#allocation3], 0
    // Predicated region
    $region2: #{mlp_forward.1} parent=1 // pred_check
      _
    $region3: #{mlp_forward.1} parent=1 // pred_check_branch
      %26 = sbr.rel (0) target = $region5
    $region4: #{mlp_forward.1} parent=1 // pred_region
      _
    $region5: #{mlp_forward.1} parent=1 // pred_fallthru
      _
    // Predicated region
    $region6: #{mlp_forward.1} parent=1 // pred_check
      _
    $region7: #{mlp_forward.1} parent=1 // pred_check_branch
      %28 = sbr.rel (0) target = $region9
    $region8: #{mlp_forward.1} parent=1 // pred_region
      _
    $region9: #{mlp_forward.1} parent=1 // pred_fallthru
      _
    // Predicated region
    $region10: #{mlp_forward.1} parent=1 // pred_check
      _
    $region11: #{mlp_forward.1} parent=1 // pred_check_branch
      %30 = sbr.rel (0) target = $region13
    $region12: #{mlp_forward.1} parent=1 // pred_region
      _
    $region13: #{mlp_forward.1} parent=1 // pred_fallthru
      _
    // Predicated region
    $region14: #{mlp_forward.1} parent=1 // pred_check
      _
    $region15: #{mlp_forward.1} parent=1 // pred_check_branch
      %32 = sbr.rel (0) target = $region17
    $region16: #{mlp_forward.1} parent=1 // pred_region
      _
    $region17: #{mlp_forward.1} parent=1 // pred_fallthru
      _
    // Predicated region
    $region18: #{mlp_forward.1} parent=1 // pred_check
      _
    $region19: #{mlp_forward.1} parent=1 // pred_check_branch
      %34 = sbr.rel (0) target = $region21
    $region20: #{mlp_forward.1} parent=1 // pred_region
      _
    $region21: #{mlp_forward.1} parent=1 // pred_fallthru
      _
    // Predicated region
    $region22: #{mlp_forward.1} parent=1 // pred_check
      _
    $region23: #{mlp_forward.1} parent=1 // pred_check_branch
      %36 = sbr.rel (0) target = $region25
    $region24: #{mlp_forward.1} parent=1 // pred_region
      _
    $region25: #{mlp_forward.1} parent=1 // pred_fallthru
      _
    // Predicated region
    $region26: #{mlp_forward.1} parent=1 // pred_check
      _
    $region27: #{mlp_forward.1} parent=1 // pred_check_branch
      %38 = sbr.rel (0) target = $region29
    $region28: #{mlp_forward.1} parent=1 // pred_region
      _
    $region29: #{mlp_forward.1} parent=1 // pred_fallthru
      _
    // Predicated region
    $region30: #{mlp_forward.1} parent=1 // pred_check
      _
    $region31: #{mlp_forward.1} parent=1 // pred_check_branch
      %40 = sbr.rel (0) target = $region33
    $region32: #{mlp_forward.1} parent=1 // pred_region
      _
    $region33: #{mlp_forward.1} parent=1 // pred_fallthru
      _
    // Predicated region
    $region34: #{mlp_forward.1} parent=1 // pred_check
      _
    $region35: #{mlp_forward.1} parent=1 // pred_check_branch
      %42 = sbr.rel (0) target = $region37
    $region36: #{mlp_forward.1} parent=1 // pred_region
      _
    $region37: #{mlp_forward.1} parent=1 // pred_fallthru
      _
    // Predicated region
    $region38: #{mlp_forward.1} parent=1 // pred_check
      _
    $region39: #{mlp_forward.1} parent=1 // pred_check_branch
      %44 = sbr.rel (0) target = $region41
    $region40: #{mlp_forward.1} parent=1 // pred_region
      _
    $region41: #{mlp_forward.1} parent=1 // pred_fallthru
      _
    // Predicated region
    $region42: #{mlp_forward.1} parent=1 // pred_check
      _
    $region43: #{mlp_forward.1} parent=1 // pred_check_branch
      %46 = sbr.rel (0) target = $region45
    $region44: #{mlp_forward.1} parent=1 // pred_region
      _
    $region45: #{mlp_forward.1} parent=1 // pred_fallthru
      _
    // Predicated region
    $region46: #{mlp_forward.1} parent=1 // pred_check
      _
    $region47: #{mlp_forward.1} parent=1 // pred_check_branch
      %48 = sbr.rel (0) target = $region49
    $region48: #{mlp_forward.1} parent=1 // pred_region
      _
    $region49: #{mlp_forward.1} parent=1 // pred_fallthru
      _
    // Predicated region
    $region50: #{mlp_forward.1} parent=1 // pred_check
      _
    $region51: #{mlp_forward.1} parent=1 // pred_check_branch
      %50 = sbr.rel (0) target = $region53
    $region52: #{mlp_forward.1} parent=1 // pred_region
      _
    $region53: #{mlp_forward.1} parent=1 // pred_fallthru
      _
    // Predicated region
    $region54: #{mlp_forward.1} parent=1 // pred_check
      _
    $region55: #{mlp_forward.1} parent=1 // pred_check_branch
      %52 = sbr.rel (0) target = $region57
    $region56: #{mlp_forward.1} parent=1 // pred_region
      _
    $region57: #{mlp_forward.1} parent=1 // pred_fallthru
      _
    // Predicated region
    $region58: #{mlp_forward.1} parent=1 // pred_check
      _
    $region59: #{mlp_forward.1} parent=1 // pred_check_branch
      %54 = sbr.rel (0) target = $region61
    $region60: #{mlp_forward.1} parent=1 // pred_region
      _
    $region61: #{mlp_forward.1} parent=1 // pred_fallthru
      _
    // Predicated region
    $region62: #{mlp_forward.1} parent=1 // pred_check
      _
    $region63: #{mlp_forward.1} parent=1 // pred_check_branch
      %56 = sbr.rel (0) target = $region65
    $region64: #{mlp_forward.1} parent=1 // pred_region
      _
    $region65: #{mlp_forward.1} parent=1 // pred_fallthru
      _
    // Predicated region
    $region66: #{mlp_forward.1} parent=1 // pred_check
      _
    $region67: #{mlp_forward.1} parent=1 // pred_check_branch
      %58 = sbr.rel (0) target = $region69
    $region68: #{mlp_forward.1} parent=1 // pred_region
      _
    $region69: #{mlp_forward.1} parent=1 // pred_fallthru
      _
    // Predicated region
    $region70: #{mlp_forward.1} parent=1 // pred_check
      _
    $region71: #{mlp_forward.1} parent=1 // pred_check_branch
      %60 = sbr.rel (0) target = $region73
    $region72: #{mlp_forward.1} parent=1 // pred_region
      _
    $region73: #{mlp_forward.1} parent=1 // pred_fallthru
      _
    // Predicated region
    $region74: #{mlp_forward.1} parent=1 // pred_check
      _
    $region75: #{mlp_forward.1} parent=1 // pred_check_branch
      %62 = sbr.rel (0) target = $region77
    $region76: #{mlp_forward.1} parent=1 // pred_region
      _
    $region77: #{mlp_forward.1} parent=1 // pred_fallthru
      _
    %v63 = vld [vmem:[%s0] sm:$0xff]
    %v64 = vld [vmem:[%s3] sm:$0x1]
    %66 = vset.pattern.permute.xlu0 0
    %67 = vperm.xlu0 %66, %v63
    %v68 = vpop.permute.xlu0 %67
    %v71 = vperm.slane %v64, 0
    %v73 = vmul.f32 %v68, %v71
    %v74 = vand.u32 2147483647, %v73
    %vm75 = vcmp.le.f32.partialorder %v74, 0.7853982
    %vm76 = vcmp.lt.s32.totalorder %v73, 0
    %v77 = vand.u32 %v73, 2139095040
    %v78 = vshrl.u32 %v77, 23
    %v79 = vsub.s32 %v78, 127
    %v80 = vand.u32 2147483647, %v73
    %v81 = vand.u32 %v80, 8388607
    %v82 = vor.u32 %v81, 8388608
    %v83 = vsub.s32 0, %v82
    %v84 = vadd.s32 %v79, 1
    %vm85 = vcmp.gt.s32.totalorder %v84, 0
    %v86 = vsel %vm85, %v84, 0
    %v87 = vshrl.u32 %v86, 5
    %v88 = vand.u32 %v86, 31
    %v89 = vsub.s32 32, %v88
    %v90 = vshrl.u32 683565275, %v89
    %v91 = vshll.u32 683565275, %v88
    %v92 = vshrl.u32 2475754826, %v89
    %v93 = vor.u32 %v91, %v92
    %v94 = vshll.u32 2475754826, %v88
    %v95 = vshrl.u32 2131351028, %v89
    %v96 = vor.u32 %v94, %v95
    %v97 = vshll.u32 2131351028, %v88
    %v98 = vshrl.u32 2102212464, %v89
    %v99 = vor.u32 %v97, %v98
    %v100 = vshll.u32 2102212464, %v88
    %v101 = vshrl.u32 920167782, %v89
    %v102 = vor.u32 %v100, %v101
    %v103 = vshll.u32 920167782, %v88
    %v104 = vshrl.u32 1326507024, %v89
    %v105 = vor.u32 %v103, %v104
    %vm106 = vcmp.lt.s32.totalorder %v87, 1
    %vm107 = vcmp.lt.s32.totalorder %v87, 2
    %vm108 = vcmp.lt.s32.totalorder %v87, 3
    %vm109 = vcmp.lt.s32.totalorder %v87, 4
    %v110 = vsel %vm106, %v90, %v93
    %v111 = vsel %vm109, %v99, 2102212464
    %v112 = vsel %vm108, %v96, %v111
    %v113 = vsel %vm107, %v110, %v112
    %v114 = vsel %vm106, %v93, %v96
    %v115 = vsel %vm109, %v102, 920167782
    %v116 = vsel %vm108, %v99, %v115
    %v117 = vsel %vm107, %v114, %v116
    %v118 = vsel %vm106, %v96, %v99
    %v119 = vsel %vm109, %v105, 1326507024
    %v120 = vsel %vm108, %v102, %v119
    %v121 = vsel %vm107, %v118, %v120
    %v122 = vshll.u32 %v82, 8
    %v123 = vand.u32 %v122, 65535
    %v124 = vshrl.u32 %v122, 16
    %v125 = vand.u32 %v121, 65535
    %v126 = vshrl.u32 %v121, 16
    %v127 = vmul.u32 %v123, %v125
    %v128 = vmul.u32 %v123, %v126
    %v129 = vmul.u32 %v124, %v125
    %v130 = vmul.u32 %v124, %v126
    %v131 = vshll.u32 %v128, 16
    %v132 = vshrl.u32 %v128, 16
    %v133 = vshll.u32 %v129, 16
    %v134 = vshrl.u32 %v129, 16
    %vm135 = vc.u32 %v127, %v131
    %v136 = vsel %vm135, 1, 0
    %v137 = vadd.s32 %v127, %v131
    %v138 = vadd.s32 %v130, %v136
    %vm139 = vc.u32 %v137, %v133
    %v140 = vsel %vm139, 1, 0
    %v141 = vadd.s32 %v137, %v133
    %v142 = vadd.s32 %v138, %v140
    %v143 = vadd.s32 %v142, %v132
    %v144 = vadd.s32 %v143, %v134
    %v145 = vand.u32 %v122, 65535
    %v146 = vshrl.u32 %v122, 16
    %v147 = vand.u32 %v117, 65535
    %v148 = vshrl.u32 %v117, 16
    %v149 = vmul.u32 %v145, %v147
    %v150 = vmul.u32 %v145, %v148
    %v151 = vmul.u32 %v146, %v147
    %v152 = vmul.u32 %v146, %v148
    %v153 = vshll.u32 %v150, 16
    %v154 = vshrl.u32 %v150, 16
    %v155 = vshll.u32 %v151, 16
    %v156 = vshrl.u32 %v151, 16
    %vm157 = vc.u32 %v149, %v153
    %v158 = vsel %vm157, 1, 0
    %v159 = vadd.s32 %v149, %v153
    %v160 = vadd.s32 %v152, %v158
    %vm161 = vc.u32 %v159, %v155
    %v162 = vsel %vm161, 1, 0
    %v163 = vadd.s32 %v159, %v155
    %v164 = vadd.s32 %v160, %v162
    %v165 = vadd.s32 %v164, %v154
    %v166 = vadd.s32 %v165, %v156
    %v167 = vmul.u32 %v122, %v113
    %v168 = vadd.s32 %v144, %v163
    %vm169 = vc.u32 %v144, %v163
    %v170 = vadd.s32 %v166, 1
    %v171 = vsel %vm169, %v170, %v166
    %v172 = vadd.s32 %v167, %v171
    %v173 = vadd.s32 %v172, 536870912
    %v174 = vshrl.u32 %v173, 30
    %v175 = vshll.u32 %v174, 30
    %v176 = vsub.s32 %v172, %v175
    %vm177 = vcmp.lt.s32.totalorder %v176, 0
    %v178 = vsub.s32 0, %v176
    %v179 = vsel %vm177, %v178, %v176
    %v180 = vclz %v179
    %v181 = vsub.s32 %v180, 2
    %vm182 = vcmp.gt.s32.totalorder 0, %v181
    %v183 = vsel %vm182, 0, %v181
    %v184 = vsub.s32 32, %v183
    %v185 = vshll.u32 %v176, %v183
    %v186 = vshrl.u32 %v168, %v184
    %v187 = vor.u32 %v185, %v186
    %v188 = vsub.s32 4294967266, %v183
    %v189 = vadd.s32 %v188, 127
    %v190 = vshll.u32 %v189, 23
    %v191 = vor.u32 4788187, %v190
    %v192 = vand.u32 2147483647, %v191
    %v194 = vcvt.s32.f32 %v187
    %v195 = vmul.f32 %v194, %v192
    %v196 = vxor.u32 %v195, 2147483648
    %v197 = vsel %vm76, %v196, %v195
    %v198 = vsub.s32 4, %v174
    %v199 = vsel %vm76, %v198, %v174
    %v200 = vsel %vm75, %v73, %v197
    %v201 = vsel %vm75, 0, %v199
    %v202 = vmul.f32 %v200, %v200
    %v203 = vmul.f32 %v202, -0.001358992
    %v204 = vadd.f32 %v203, 0.041655596
    %v205 = vmul.f32 %v202, %v204
    %v206 = vadd.f32 %v205, -0.4999988
    %v207 = vmul.f32 %v202, %v206
    %v208 = vadd.f32 1.0, %v207
    %v209 = vmul.f32 %v200, %v200
    %v210 = vmul.f32 %v209, -0.00019511016
    %v211 = vadd.f32 %v210, 0.008332121
    %v212 = vmul.f32 %v209, %v211
    %v213 = vadd.f32 %v212, -0.16666654
    %v214 = vmul.f32 %v209, %v213
    %v215 = vadd.f32 %v214, 1.0
    %v216 = vmul.f32 %v215, %v200
    %vm217 = vweird.f32 %v73
    %v218 = vadd.s32 %v201, 3
    %v219 = vand.u32 %v218, 3
    %vm220 = vcmp.lt.s32.totalorder %v219, 2
    %vm221 = vcmp.eq.s32.totalorder %v219, 0
    %v222 = vxor.u32 %v216, 2147483648
    %v223 = vsel %vm221, %v208, %v222
    %vm224 = vcmp.eq.s32.totalorder %v219, 2
    %v225 = vxor.u32 %v208, 2147483648
    %v226 = vsel %vm224, %v225, %v216
    %v227 = vsel %vm220, %v223, %v226
    %v228 = vsel %vm217, nan, %v227
    %v229 = vld [vmem:[%s4] sm:$0xff]
    %v230 = vand.u32 2147483647, %v73
    %vm231 = vcmp.le.f32.partialorder %v230, 0.7853982
    %vm232 = vcmp.lt.s32.totalorder %v73, 0
    %v233 = vand.u32 %v73, 2139095040
    %v234 = vshrl.u32 %v233, 23
    %v235 = vsub.s32 %v234, 127
    %v236 = vand.u32 2147483647, %v73
    %v237 = vand.u32 %v236, 8388607
    %v238 = vor.u32 %v237, 8388608
    %v239 = vsub.s32 0, %v238
    %v240 = vadd.s32 %v235, 1
    %vm241 = vcmp.gt.s32.totalorder %v240, 0
    %v242 = vsel %vm241, %v240, 0
    %v243 = vshrl.u32 %v242, 5
    %v244 = vand.u32 %v242, 31
    %v245 = vsub.s32 32, %v244
    %v246 = vshrl.u32 683565275, %v245
    %v247 = vshll.u32 683565275, %v244
    %v248 = vshrl.u32 2475754826, %v245
    %v249 = vor.u32 %v247, %v248
    %v250 = vshll.u32 2475754826, %v244
    %v251 = vshrl.u32 2131351028, %v245
    %v252 = vor.u32 %v250, %v251
    %v253 = vshll.u32 2131351028, %v244
    %v254 = vshrl.u32 2102212464, %v245
    %v255 = vor.u32 %v253, %v254
    %v256 = vshll.u32 2102212464, %v244
    %v257 = vshrl.u32 920167782, %v245
    %v258 = vor.u32 %v256, %v257
    %v259 = vshll.u32 920167782, %v244
    %v260 = vshrl.u32 1326507024, %v245
    %v261 = vor.u32 %v259, %v260
    %vm262 = vcmp.lt.s32.totalorder %v243, 1
    %vm263 = vcmp.lt.s32.totalorder %v243, 2
    %vm264 = vcmp.lt.s32.totalorder %v243, 3
    %vm265 = vcmp.lt.s32.totalorder %v243, 4
    %v266 = vsel %vm262, %v246, %v249
    %v267 = vsel %vm265, %v255, 2102212464
    %v268 = vsel %vm264, %v252, %v267
    %v269 = vsel %vm263, %v266, %v268
    %v270 = vsel %vm262, %v249, %v252
    %v271 = vsel %vm265, %v258, 920167782
    %v272 = vsel %vm264, %v255, %v271
    %v273 = vsel %vm263, %v270, %v272
    %v274 = vsel %vm262, %v252, %v255
    %v275 = vsel %vm265, %v261, 1326507024
    %v276 = vsel %vm264, %v258, %v275
    %v277 = vsel %vm263, %v274, %v276
    %v278 = vshll.u32 %v238, 8
    %v279 = vand.u32 %v278, 65535
    %v280 = vshrl.u32 %v278, 16
    %v281 = vand.u32 %v277, 65535
    %v282 = vshrl.u32 %v277, 16
    %v283 = vmul.u32 %v279, %v281
    %v284 = vmul.u32 %v279, %v282
    %v285 = vmul.u32 %v280, %v281
    %v286 = vmul.u32 %v280, %v282
    %v287 = vshll.u32 %v284, 16
    %v288 = vshrl.u32 %v284, 16
    %v289 = vshll.u32 %v285, 16
    %v290 = vshrl.u32 %v285, 16
    %vm291 = vc.u32 %v283, %v287
    %v292 = vsel %vm291, 1, 0
    %v293 = vadd.s32 %v283, %v287
    %v294 = vadd.s32 %v286, %v292
    %vm295 = vc.u32 %v293, %v289
    %v296 = vsel %vm295, 1, 0
    %v297 = vadd.s32 %v293, %v289
    %v298 = vadd.s32 %v294, %v296
    %v299 = vadd.s32 %v298, %v288
    %v300 = vadd.s32 %v299, %v290
    %v301 = vand.u32 %v278, 65535
    %v302 = vshrl.u32 %v278, 16
    %v303 = vand.u32 %v273, 65535
    %v304 = vshrl.u32 %v273, 16
    %v305 = vmul.u32 %v301, %v303
    %v306 = vmul.u32 %v301, %v304
    %v307 = vmul.u32 %v302, %v303
    %v308 = vmul.u32 %v302, %v304
    %v309 = vshll.u32 %v306, 16
    %v310 = vshrl.u32 %v306, 16
    %v311 = vshll.u32 %v307, 16
    %v312 = vshrl.u32 %v307, 16
    %vm313 = vc.u32 %v305, %v309
    %v314 = vsel %vm313, 1, 0
    %v315 = vadd.s32 %v305, %v309
    %v316 = vadd.s32 %v308, %v314
    %vm317 = vc.u32 %v315, %v311
    %v318 = vsel %vm317, 1, 0
    %v319 = vadd.s32 %v315, %v311
    %v320 = vadd.s32 %v316, %v318
    %v321 = vadd.s32 %v320, %v310
    %v322 = vadd.s32 %v321, %v312
    %v323 = vmul.u32 %v278, %v269
    %v324 = vadd.s32 %v300, %v319
    %vm325 = vc.u32 %v300, %v319
    %v326 = vadd.s32 %v322, 1
    %v327 = vsel %vm325, %v326, %v322
    %v328 = vadd.s32 %v323, %v327
    %v329 = vadd.s32 %v328, 536870912
    %v330 = vshrl.u32 %v329, 30
    %v331 = vshll.u32 %v330, 30
    %v332 = vsub.s32 %v328, %v331
    %vm333 = vcmp.lt.s32.totalorder %v332, 0
    %v334 = vsub.s32 0, %v332
    %v335 = vsel %vm333, %v334, %v332
    %v336 = vclz %v335
    %v337 = vsub.s32 %v336, 2
    %vm338 = vcmp.gt.s32.totalorder 0, %v337
    %v339 = vsel %vm338, 0, %v337
    %v340 = vsub.s32 32, %v339
    %v341 = vshll.u32 %v332, %v339
    %v342 = vshrl.u32 %v324, %v340
    %v343 = vor.u32 %v341, %v342
    %v344 = vsub.s32 4294967266, %v339
    %v345 = vadd.s32 %v344, 127
    %v346 = vshll.u32 %v345, 23
    %v347 = vor.u32 4788187, %v346
    %v348 = vand.u32 2147483647, %v347
    %v350 = vcvt.s32.f32 %v343
    %v351 = vmul.f32 %v350, %v348
    %v352 = vxor.u32 %v351, 2147483648
    %v353 = vsel %vm232, %v352, %v351
    %v354 = vsub.s32 4, %v330
    %v355 = vsel %vm232, %v354, %v330
    %v356 = vsel %vm231, %v73, %v353
    %v357 = vsel %vm231, 0, %v355
    %v358 = vmul.f32 %v356, %v356
    %v359 = vmul.f32 %v358, -0.001358992
    %v360 = vadd.f32 %v359, 0.041655596
    %v361 = vmul.f32 %v358, %v360
    %v362 = vadd.f32 %v361, -0.4999988
    %v363 = vmul.f32 %v358, %v362
    %v364 = vadd.f32 1.0, %v363
    %v365 = vmul.f32 %v356, %v356
    %v366 = vmul.f32 %v365, -0.00019511016
    %v367 = vadd.f32 %v366, 0.008332121
    %v368 = vmul.f32 %v365, %v367
    %v369 = vadd.f32 %v368, -0.16666654
    %v370 = vmul.f32 %v365, %v369
    %v371 = vadd.f32 %v370, 1.0
    %v372 = vmul.f32 %v371, %v356
    %vm373 = vweird.f32 %v73
    %v374 = vand.u32 %v357, 3
    %vm375 = vcmp.lt.s32.totalorder %v374, 2
    %vm376 = vcmp.eq.s32.totalorder %v374, 0
    %v377 = vxor.u32 %v372, 2147483648
    %v378 = vsel %vm376, %v364, %v377
    %vm379 = vcmp.eq.s32.totalorder %v374, 2
    %v380 = vxor.u32 %v364, 2147483648
    %v381 = vsel %vm379, %v380, %v372
    %v382 = vsel %vm375, %v378, %v381
    %v383 = vsel %vm373, nan, %v382
    %v384 = vld [vmem:[%s5] sm:$0xff]
    %vm385 = vcmask 64512
    %v387 = vsel %vm385, %v383, 0
    %389 = vmatpush.msra.mxu0 0.0
    %390 = vmatpush.msra.mxu0 0.0
    %391 = vmatpush.msra.mxu0 0.0
    %392 = vmatpush.msra.mxu0 0.0
    %393 = vmatpush.msra.mxu0 0.0
    %394 = vmatpush.msra.mxu0 0.0
    %395 = vmatpush.msra.mxu0 0.0
    %396 = vmatpush.msra.mxu0 0.0
    %397 = vmatpush.msra.mxu0 0.0
    %398 = vmatpush.msra.mxu0 0.0
    %399 = vmatpush.msra.mxu0 0.0
    %400 = vmatpush.msra.mxu0 0.0
    %401 = vmatpush.msra.mxu0 0.0
    %402 = vmatpush.msra.mxu0 0.0
    %403 = vmatpush.msra.mxu0 0.0
    %404 = vmatpush.msra.mxu0 %v384
    %405 = vmatmul.f32.gmra.mxu0 %v387
    %v406 = vpop.f32.mrf.mxu0
    %v407 = vadd.f32 0.0, %v406
    %408 = vdwg.mxu0
    %v410 = vsel %vm385, %v228, 0
    %412 = vmatpush.msra.mxu0 0.0
    %413 = vmatpush.msra.mxu0 0.0
    %414 = vmatpush.msra.mxu0 0.0
    %415 = vmatpush.msra.mxu0 0.0
    %416 = vmatpush.msra.mxu0 0.0
    %417 = vmatpush.msra.mxu0 0.0
    %418 = vmatpush.msra.mxu0 0.0
    %419 = vmatpush.msra.mxu0 0.0
    %420 = vmatpush.msra.mxu0 0.0
    %421 = vmatpush.msra.mxu0 0.0
    %422 = vmatpush.msra.mxu0 0.0
    %423 = vmatpush.msra.mxu0 0.0
    %424 = vmatpush.msra.mxu0 0.0
    %425 = vmatpush.msra.mxu0 0.0
    %426 = vmatpush.msra.mxu0 0.0
    %427 = vmatpush.msra.mxu0 %v229
    %428 = vmatmul.f32.gmra.mxu0 %v410
    %v429 = vpop.f32.mrf.mxu0
    %v430 = vadd.f32 %v407, %v429
    %431 = vdwg.mxu0
    %v432 = vld [vmem:[%s6] sm:$0x1]
    %v434 = vperm.slane %v432, 0
    %v436 = vadd.f32 %v430, %v434
    %v437 = vmax.f32 %v436, 0.0
    %vm438 = vcmp.ne.f32.partialorder %v436, %v436
    %v439 = vadd.f32 %v436, 0.0
    %v440 = vand.u32 2147483647, %v436
    %v441 = vsub.f32 0.0, %v440
    %v442 = vmul.f32 %v441, 1.442695
    %v443 = vpow.pop %v442
    %v444 = vadd.f32 %v443, 1.0
    %v445 = vlog2.pop %v444
    %v446 = vmul.f32 %v445, 0.6931472
    %v447 = vmul.f32 -0.5, %v443
    %v448 = vadd.f32 %v447, 1.0
    %v449 = vmul.f32 %v448, %v443
    %v450 = vand.u32 2147483647, %v443
    %vm451 = vcmp.lt.f32.partialorder %v450, 0.0004427343
    %v452 = vsel %vm451, %v449, %v446
    %v453 = vadd.f32 %v437, %v452
    %v454 = vsel %vm438, %v439, %v453
    %v455 = vtanh.pop %v454
    %v456 = vmul.f32 %v436, %v455
    %v457 = vld [vmem:[%s7] sm:$0xff]
    %v458 = vld [vmem:[%s7 + $0x8] sm:$0xff]
    %v459 = vld [vmem:[%s7 + $0x10] sm:$0xff]
    %v460 = vld [vmem:[%s7 + $0x18] sm:$0xff]
    %v461 = vld [vmem:[%s8] sm:$0x1]
    %v463 = vperm.slane %v461, 0
    %vm465 = vcmask 261120
    %v467 = vsel %vm465, %v456, 0
    %469 = vmatpush.msra.mxu0 0.0
    %470 = vmatpush.msra.mxu0 0.0
    %471 = vmatpush.msra.mxu0 0.0
    %472 = vmatpush.msra.mxu0 0.0
    %473 = vmatpush.msra.mxu0 0.0
    %474 = vmatpush.msra.mxu0 0.0
    %475 = vmatpush.msra.mxu0 0.0
    %476 = vmatpush.msra.mxu0 0.0
    %477 = vmatpush.msra.mxu0 0.0
    %478 = vmatpush.msra.mxu0 0.0
    %479 = vmatpush.msra.mxu0 0.0
    %480 = vmatpush.msra.mxu0 0.0
    %481 = vmatpush.msra.mxu0 %v460
    %482 = vmatpush.msra.mxu0 %v459
    %483 = vmatpush.msra.mxu0 %v458
    %484 = vmatpush.msra.mxu0 %v457
    %485 = vmatmul.f32.gmra.mxu0 %v467
    %v486 = vpop.f32.mrf.mxu0
    %v487 = vadd.f32 %v463, %v486
    %488 = vdwg.mxu0
    %v489 = vld [vmem:[%s1] sm:$0xff]
    %v490 = vld [vmem:[%s9] sm:$0xff]
    %v491 = vld [vmem:[%s2] sm:$0xff]
    %v492 = vld [vmem:[%s10] sm:$0xff]
    %v493 = vld [vmem:[%s10 + $0x8] sm:$0xff]
    %vm494 = vcmask 130048
    %v496 = vsel %vm494, %v491, 0
    %498 = vmatpush.msra.mxu0 0.0
    %499 = vmatpush.msra.mxu0 0.0
    %500 = vmatpush.msra.mxu0 0.0
    %501 = vmatpush.msra.mxu0 0.0
    %502 = vmatpush.msra.mxu0 0.0
    %503 = vmatpush.msra.mxu0 0.0
    %504 = vmatpush.msra.mxu0 0.0
    %505 = vmatpush.msra.mxu0 0.0
    %506 = vmatpush.msra.mxu0 0.0
    %507 = vmatpush.msra.mxu0 0.0
    %508 = vmatpush.msra.mxu0 0.0
    %509 = vmatpush.msra.mxu0 0.0
    %510 = vmatpush.msra.mxu0 0.0
    %511 = vmatpush.msra.mxu0 0.0
    %512 = vmatpush.msra.mxu0 %v493
    %513 = vmatpush.msra.mxu0 %v492
    %514 = vmatmul.f32.gmra.mxu0 %v496
    %v515 = vpop.f32.mrf.mxu0
    %v516 = vadd.f32 0.0, %v515
    %517 = vdwg.mxu0
    %v519 = vsel %vm385, %v489, 0
    %521 = vmatpush.msra.mxu0 0.0
    %522 = vmatpush.msra.mxu0 0.0
    %523 = vmatpush.msra.mxu0 0.0
    %524 = vmatpush.msra.mxu0 0.0
    %525 = vmatpush.msra.mxu0 0.0
    %526 = vmatpush.msra.mxu0 0.0
    %527 = vmatpush.msra.mxu0 0.0
    %528 = vmatpush.msra.mxu0 0.0
    %529 = vmatpush.msra.mxu0 0.0
    %530 = vmatpush.msra.mxu0 0.0
    %531 = vmatpush.msra.mxu0 0.0
    %532 = vmatpush.msra.mxu0 0.0
    %533 = vmatpush.msra.mxu0 0.0
    %534 = vmatpush.msra.mxu0 0.0
    %535 = vmatpush.msra.mxu0 0.0
    %536 = vmatpush.msra.mxu0 %v490
    %537 = vmatmul.f32.gmra.mxu0 %v519
    %v538 = vpop.f32.mrf.mxu0
    %v539 = vadd.f32 %v516, %v538
    %540 = vdwg.mxu0
    %v541 = vld [vmem:[%s11] sm:$0xff]
    %v542 = vld [vmem:[%s11 + $0x8] sm:$0xff]
    %v544 = vsel %vm494, %v487, 0
    %546 = vmatpush.msra.mxu0 0.0
    %547 = vmatpush.msra.mxu0 0.0
    %548 = vmatpush.msra.mxu0 0.0
    %549 = vmatpush.msra.mxu0 0.0
    %550 = vmatpush.msra.mxu0 0.0
    %551 = vmatpush.msra.mxu0 0.0
    %552 = vmatpush.msra.mxu0 0.0
    %553 = vmatpush.msra.mxu0 0.0
    %554 = vmatpush.msra.mxu0 0.0
    %555 = vmatpush.msra.mxu0 0.0
    %556 = vmatpush.msra.mxu0 0.0
    %557 = vmatpush.msra.mxu0 0.0
    %558 = vmatpush.msra.mxu0 0.0
    %559 = vmatpush.msra.mxu0 0.0
    %560 = vmatpush.msra.mxu0 %v542
    %561 = vmatpush.msra.mxu0 %v541
    %562 = vmatmul.f32.gmra.mxu0 %v544
    %v563 = vpop.f32.mrf.mxu0
    %v564 = vadd.f32 0.0, %v563
    %565 = vdwg.mxu0
    %v566 = vadd.f32 %v539, %v564
    %v567 = vld [vmem:[%s12] sm:$0x1]
    %v569 = vperm.slane %v567, 0
    %v571 = vadd.f32 %v566, %v569
    %v572 = vmax.f32 %v571, 0.0
    %vm573 = vcmp.ne.f32.partialorder %v571, %v571
    %v574 = vadd.f32 %v571, 0.0
    %v575 = vand.u32 2147483647, %v571
    %v576 = vsub.f32 0.0, %v575
    %v577 = vmul.f32 %v576, 1.442695
    %v578 = vpow.pop %v577
    %v579 = vadd.f32 %v578, 1.0
    %v580 = vlog2.pop %v579
    %v581 = vmul.f32 %v580, 0.6931472
    %v582 = vmul.f32 -0.5, %v578
    %v583 = vadd.f32 %v582, 1.0
    %v584 = vmul.f32 %v583, %v578
    %v585 = vand.u32 2147483647, %v578
    %vm586 = vcmp.lt.f32.partialorder %v585, 0.0004427343
    %v587 = vsel %vm586, %v584, %v581
    %v588 = vadd.f32 %v572, %v587
    %v589 = vsel %vm573, %v574, %v588
    %v590 = vtanh.pop %v589
    %v591 = vmul.f32 %v571, %v590
    %v592 = vld [vmem:[%s13] sm:$0xff]
    %v593 = vld [vmem:[%s13 + $0x8] sm:$0xff]
    %v594 = vld [vmem:[%s13 + $0x10] sm:$0xff]
    %v595 = vld [vmem:[%s13 + $0x18] sm:$0xff]
    %v596 = vld [vmem:[%s14] sm:$0x1]
    %v598 = vperm.slane %v596, 0
    %v601 = vsel %vm465, %v591, 0
    %603 = vmatpush.msra.mxu0 0.0
    %604 = vmatpush.msra.mxu0 0.0
    %605 = vmatpush.msra.mxu0 0.0
    %606 = vmatpush.msra.mxu0 0.0
    %607 = vmatpush.msra.mxu0 0.0
    %608 = vmatpush.msra.mxu0 0.0
    %609 = vmatpush.msra.mxu0 0.0
    %610 = vmatpush.msra.mxu0 0.0
    %611 = vmatpush.msra.mxu0 0.0
    %612 = vmatpush.msra.mxu0 0.0
    %613 = vmatpush.msra.mxu0 0.0
    %614 = vmatpush.msra.mxu0 0.0
    %615 = vmatpush.msra.mxu0 %v595
    %616 = vmatpush.msra.mxu0 %v594
    %617 = vmatpush.msra.mxu0 %v593
    %618 = vmatpush.msra.mxu0 %v592
    %619 = vmatmul.f32.gmra.mxu0 %v601
    %v620 = vpop.f32.mrf.mxu0
    %v621 = vadd.f32 %v598, %v620
    %622 = vdwg.mxu0
    %v623 = vmax.f32 %v621, 0.0
    %vm624 = vcmp.ne.f32.partialorder %v621, %v621
    %v625 = vadd.f32 %v621, 0.0
    %v626 = vand.u32 2147483647, %v621
    %v627 = vsub.f32 0.0, %v626
    %v628 = vmul.f32 %v627, 1.442695
    %v629 = vpow.pop %v628
    %v630 = vadd.f32 %v629, 1.0
    %v631 = vlog2.pop %v630
    %v632 = vmul.f32 %v631, 0.6931472
    %v633 = vmul.f32 -0.5, %v629
    %v634 = vadd.f32 %v633, 1.0
    %v635 = vmul.f32 %v634, %v629
    %v636 = vand.u32 2147483647, %v629
    %vm637 = vcmp.lt.f32.partialorder %v636, 0.0004427343
    %v638 = vsel %vm637, %v635, %v632
    %v639 = vadd.f32 %v623, %v638
    %v640 = vsel %vm624, %v625, %v639
    %v641 = vtanh.pop %v640
    %v642 = vmul.f32 %v621, %v641
    %v643 = vld [vmem:[%s15] sm:$0xff]
    %v644 = vld [vmem:[%s15 + $0x8] sm:$0xff]
    %v645 = vld [vmem:[%s15 + $0x10] sm:$0xff]
    %v646 = vld [vmem:[%s15 + $0x18] sm:$0xff]
    %v647 = vld [vmem:[%s16] sm:$0x1]
    %v649 = vperm.slane %v647, 0
    %v652 = vsel %vm465, %v642, 0
    %654 = vmatpush.msra.mxu0 0.0
    %655 = vmatpush.msra.mxu0 0.0
    %656 = vmatpush.msra.mxu0 0.0
    %657 = vmatpush.msra.mxu0 0.0
    %658 = vmatpush.msra.mxu0 0.0
    %659 = vmatpush.msra.mxu0 0.0
    %660 = vmatpush.msra.mxu0 0.0
    %661 = vmatpush.msra.mxu0 0.0
    %662 = vmatpush.msra.mxu0 0.0
    %663 = vmatpush.msra.mxu0 0.0
    %664 = vmatpush.msra.mxu0 0.0
    %665 = vmatpush.msra.mxu0 0.0
    %666 = vmatpush.msra.mxu0 %v646
    %667 = vmatpush.msra.mxu0 %v645
    %668 = vmatpush.msra.mxu0 %v644
    %669 = vmatpush.msra.mxu0 %v643
    %670 = vmatmul.f32.gmra.mxu0 %v652
    %v671 = vpop.f32.mrf.mxu0
    %v672 = vadd.f32 %v649, %v671
    %673 = vdwg.mxu0
    %v674 = vmax.f32 %v672, 0.0
    %vm675 = vcmp.ne.f32.partialorder %v672, %v672
    %v676 = vadd.f32 %v672, 0.0
    %v677 = vand.u32 2147483647, %v672
    %v678 = vsub.f32 0.0, %v677
    %v679 = vmul.f32 %v678, 1.442695
    %v680 = vpow.pop %v679
    %v681 = vadd.f32 %v680, 1.0
    %v682 = vlog2.pop %v681
    %v683 = vmul.f32 %v682, 0.6931472
    %v684 = vmul.f32 -0.5, %v680
    %v685 = vadd.f32 %v684, 1.0
    %v686 = vmul.f32 %v685, %v680
    %v687 = vand.u32 2147483647, %v680
    %vm688 = vcmp.lt.f32.partialorder %v687, 0.0004427343
    %v689 = vsel %vm688, %v686, %v683
    %v690 = vadd.f32 %v674, %v689
    %v691 = vsel %vm675, %v676, %v690
    %v692 = vtanh.pop %v691
    %v693 = vmul.f32 %v672, %v692
    %v694 = vld [vmem:[%s17] sm:$0xff]
    %v695 = vld [vmem:[%s17 + $0x8] sm:$0xff]
    %v696 = vld [vmem:[%s17 + $0x10] sm:$0xff]
    %v697 = vld [vmem:[%s17 + $0x18] sm:$0xff]
    %v698 = vld [vmem:[%s18] sm:$0x1]
    %v700 = vperm.slane %v698, 0
    %v703 = vsel %vm465, %v693, 0
    %705 = vmatpush.msra.mxu0 0.0
    %706 = vmatpush.msra.mxu0 0.0
    %707 = vmatpush.msra.mxu0 0.0
    %708 = vmatpush.msra.mxu0 0.0
    %709 = vmatpush.msra.mxu0 0.0
    %710 = vmatpush.msra.mxu0 0.0
    %711 = vmatpush.msra.mxu0 0.0
    %712 = vmatpush.msra.mxu0 0.0
    %713 = vmatpush.msra.mxu0 0.0
    %714 = vmatpush.msra.mxu0 0.0
    %715 = vmatpush.msra.mxu0 0.0
    %716 = vmatpush.msra.mxu0 0.0
    %717 = vmatpush.msra.mxu0 %v697
    %718 = vmatpush.msra.mxu0 %v696
    %719 = vmatpush.msra.mxu0 %v695
    %720 = vmatpush.msra.mxu0 %v694
    %721 = vmatmul.f32.gmra.mxu0 %v703
    %v722 = vpop.f32.mrf.mxu0
    %v723 = vadd.f32 %v700, %v722
    %724 = vdwg.mxu0
    %725 = vst [vmem:[#allocation2] sm:$0xff] %v723
    // Predicated region
    $region78: #{mlp_forward.1} parent=1 // pred_check
      _
    $region79: #{mlp_forward.1} parent=1 // pred_check_branch
      %727 = sbr.rel (0) target = $region81
    $region80: #{mlp_forward.1} parent=1 // pred_region
      %729 = vsyncadd [#allocation3], 0
      %s731 = sshll.u32 [#allocation2], 4
      %s732 = int_to_ptr.vmem [resolvable:$true] %s731
      %s733 = sshll.u32 %s19, 4
      %s734 = int_to_ptr.hbm [resolvable:$true] %s733
      %736 = dma.vmem_to_hbm [thread:$0]  %s732, 128, %s734, [#allocation3]
    $region81: #{mlp_forward.1} parent=1 // pred_fallthru
      _
    // Predicated region
    $region82: #{mlp_forward.1} parent=1 // pred_check
      _
    $region83: #{mlp_forward.1} parent=1 // pred_check_branch
      %738 = sbr.rel (0) target = $region85
    $region84: #{mlp_forward.1} parent=1 // pred_region
      %740 = dma.done [#allocation3], 128
    $region85: #{mlp_forward.1} parent=1 // pred_fallthru
      _
    %741 = vsyncpa [#allocation3], 1

</llo_original>
